<compile_context>
chip_gen: v6e
topology: v6e:2x2x1
jax: 0.10.0
libtpu: 0.0.40
codegen_flags: <defaults>
</compile_context>

<pallas_src>
import functools

import numpy as np
import jax
import jax.numpy as jnp
from jax.experimental import pallas as pl
from jax.experimental.pallas import tpu as pltpu


def _align8(n):
    return ((n + 7) // 8) * 8


# --------------------------------------------------------------------------
# packed-parameter layouts
# --------------------------------------------------------------------------

# dynamic (runtime-parameter) tile, built on device inside jit:
_ROW_W2F = 0                        # 16 rows: Linear(16,3) weight, tiled to (16, H*W)
_ROW_W1 = 16                        # 1 row  : Linear(1,16) weight (1, 16)
_ROW_B1 = 17                        # 1 row  : Linear(1,16) bias   (1, 16)
_ROW_B2F = 18                       # 1 row  : Linear(16,3) bias, tiled to (1, H*W)
_ROW_KL = 19                        # 1 row  : [kappa, lambda]
_DYN_ROWS = _align8(_ROW_KL + 1)    # 24


def _const_layout(N, C, H, W):
    """Row layout of the shape-only constant tile (DFT matrix + hinge selectors).

    Every block's row start AND extent is padded to a multiple of 8 so reads are
    whole sublane tiles (perf-review item)."""
    HW = H * W
    F2 = 2 * H * (W // 2 + 1)
    NC = N * C
    HWp = _align8(HW)               # DFT block: HW rows padded to HWp
    NCp = _align8(NC)               # per-m selector block: NC rows padded to NCp
    return dict(kdft=0, sel0=HWp, sel_stride=NCp,
                rows=_align8(HWp + N * NCp), cols=max(F2, HW))


def make_rfft2_dft_matrices(H, W):
    """Dense real/imag DFT matrices so that rfft2(x, norm='ortho') =
    (x.reshape(-1, H*W) @ (Kre + i*Kim)).reshape(-1, H, W//2+1)."""
    Wr = W // 2 + 1
    i = np.arange(H)[:, None, None, None]
    j = np.arange(W)[None, :, None, None]
    k = np.arange(H)[None, None, :, None]
    l = np.arange(Wr)[None, None, None, :]
    theta = 2.0 * np.pi * (i * k / H + j * l / W)              # (H, W, H, Wr)
    scale = 1.0 / np.sqrt(H * W)                                # ortho norm
    kre = (np.cos(theta) * scale).reshape(H * W, H * Wr).astype(np.float32)
    kim = (-np.sin(theta) * scale).reshape(H * W, H * Wr).astype(np.float32)
    return kre, kim


@functools.lru_cache(maxsize=None)
def _const_tile(N, C, H, W):
    """Shape-only constants: [Re|Im] DFT matrix + per-m hinge row selectors.
    Cached per shape; becomes an XLA constant (uploaded once per compile)."""
    lay = _const_layout(N, C, H, W)
    HW = H * W
    F2 = 2 * H * (W // 2 + 1)
    NC = N * C
    kre, kim = make_rfft2_dft_matrices(H, W)
    P = np.zeros((lay["rows"], lay["cols"]), np.float32)
    P[lay["kdft"]:lay["kdft"] + HW, 0:F2] = np.concatenate([kre, kim], axis=1)
    # selector m: sel_m[r, q] = 1 iff r == m*C + (q // W)  (picks hinge row h(q))
    h_of_q = np.arange(HW) // W
    rows_idx = np.arange(NC)[:, None]
    for m in range(N):
        sel = (rows_idx == (m * C + h_of_q)[None, :]).astype(np.float32)   # (NC, HW)
        r0 = lay["sel0"] + m * lay["sel_stride"]
        P[r0:r0 + NC, 0:HW] = sel
    return P, lay


# --------------------------------------------------------------------------
# kernel
# --------------------------------------------------------------------------

def hybrid_apa_kernel(x_ref, c_ref, d_ref, o_ref, *, N, C, H, W):
    """Fused HybridAPA forward for a block of G whole samples.

    x_ref : (G, NC, HW)   VMEM  flattened inputs (row r = n*C + c, col q = h*W + w)
    c_ref : (rows, cols)  VMEM  constant tile: [Re|Im] DFT + hinge selectors
    d_ref : (24, cols)    VMEM  dynamic params: w2f, w1, b1, b2f, [kappa, lambda]
    o_ref : (G, NC, HW)   VMEM
    """
    HW = H * W
    Wr = W // 2 + 1
    HWr = H * Wr
    F2 = 2 * HWr
    NC = N * C
    lay = _const_layout(N, C, H, W)
    G = x_ref.shape[0]

    xf = x_ref[...]                                            # (G, NC, HW) f32

    # ---- dynamic params (tiny aligned reads from the packed tile) ----------
    w1 = d_ref[_ROW_W1:_ROW_W1 + 1, 0:16]                      # (1, 16)
    b1 = d_ref[_ROW_B1:_ROW_B1 + 1, 0:16]                      # (1, 16)
    b2f = d_ref[_ROW_B2F:_ROW_B2F + 1, 0:HW]                   # (1, HW)
    kappa = d_ref[_ROW_KL:_ROW_KL + 1, 0:1]                    # (1, 1)
    lam = d_ref[_ROW_KL:_ROW_KL + 1, 1:2]                      # (1, 1)

    # ---- rfft2 magnitude mean ----------------------------------------------
    # Size-gated: unrolled VPU broadcast-MACs at tiny row counts (keeps the MXU
    # fill/drain off the serial critical path), single MXU matmul at >=128 rows.
    if G * NC >= 128:
        kdft = c_ref[lay["kdft"]:lay["kdft"] + HW, 0:F2]       # (HW, F2)
        reim = jnp.dot(xf.reshape(G * NC, HW), kdft,
                       preferred_element_type=jnp.float32).reshape(G, NC, F2)
    else:
        reim = jnp.zeros((G, NC, F2), jnp.float32)
        for q in range(HW):                                    # static unroll
            reim = reim + xf[..., q:q + 1] * c_ref[lay["kdft"] + q:lay["kdft"] + q + 1, 0:F2]
    re = reim[..., 0:HWr]
    im = reim[..., HWr:F2]
    mag_mean = jnp.mean(jnp.sqrt(re * re + im * im), axis=-1, keepdims=True)   # (G,NC,1)

    # ---- fft_adapter MLP: Linear(1,16) -> ReLU -> Linear(16,3) --------------
    hid = jnp.maximum(mag_mean * w1 + b1, 0.0)                 # (G, NC, 16)
    if G * NC >= 128:
        w2f = d_ref[_ROW_W2F:_ROW_W2F + 16, 0:HW]              # (16, HW)
        hinges_flat = jnp.dot(hid.reshape(G * NC, 16), w2f,
                              preferred_element_type=jnp.float32
                              ).reshape(G, NC, HW) + b2f
    else:
        acc = jnp.zeros((G, NC, HW), jnp.float32)
        for k in range(16):                                    # static unroll (VPU)
            acc = acc + hid[..., k:k + 1] * d_ref[_ROW_W2F + k:_ROW_W2F + k + 1, 0:HW]
        hinges_flat = acc + b2f                                # (G, NC, HW)

    # ---- APA branch (EUP work; fused so it hides under the VPU/XLU chain) ---
    # NOTE: assumes lambda_ > 0 (same effective domain as torch .pow).
    base = lam * jnp.exp(-kappa * xf) + 1.0
    apa = jnp.exp((-1.0 / lam) * jnp.log(base))

    # ---- piecewise hinge branch ----------------------------------------------
    # term m subtracts hinges_flat[m*C + h(q), q]; the stored one-hot selector
    # picks that row via multiply + full-sublane reduction (no value row-slices).
    pw = jnp.zeros_like(xf)
    for m in range(N):                                         # static unroll
        r0 = lay["sel0"] + m * lay["sel_stride"]
        sel = c_ref[r0:r0 + NC, 0:HW]                          # (NC, HW)
        hvec = jnp.sum(sel * hinges_flat, axis=-2, keepdims=True)   # (G, 1, HW)
        pw = pw + jnp.maximum(xf - hvec, 0.0)

    o_ref[...] = apa + pw


# --------------------------------------------------------------------------
# jitted wrapper (cached per shape) + public entry points
# --------------------------------------------------------------------------

def _impl(xs, W1, b1, W2, b2, kappa, lam, *, const_np, N, C, H, W, G, K_pad):
    """Traced once per shape under jax.jit; all packing is device-side."""
    K = xs.shape[0]
    HW = H * W
    NC = N * C
    cols = max(16, HW)

    xf = xs.astype(jnp.float32).reshape(K, NC, HW)
    if K_pad != K:
        xf = jnp.pad(xf, ((0, K_pad - K), (0, 0), (0, 0)))

    def padc(a):
        a = a.astype(jnp.float32)
        return jnp.pad(a, ((0, 0), (0, cols - a.shape[1])))

    # dynamic-parameter tile, pre-laid-out for flattened column order q = h*W + w
    w2f = padc(jnp.tile(jnp.asarray(W2, jnp.float32).T, (1, H)))              # (16, cols)
    w1r = padc(jnp.reshape(jnp.asarray(W1, jnp.float32), (1, 16)))
    b1r = padc(jnp.reshape(jnp.asarray(b1, jnp.float32), (1, 16)))
    b2f = padc(jnp.tile(jnp.reshape(jnp.asarray(b2, jnp.float32), (1, W)), (1, H)))
    klr = padc(jnp.concatenate(
        [jnp.reshape(jnp.asarray(kappa, jnp.float32), (1, 1)),
         jnp.reshape(jnp.asarray(lam, jnp.float32), (1, 1))], axis=1))
    dyn = jnp.concatenate([w2f, w1r, b1r, b2f, klr], axis=0)                  # (20, cols)
    dyn = jnp.pad(dyn, ((0, _DYN_ROWS - dyn.shape[0]), (0, 0)))               # (24, cols)

    const_arr = jnp.asarray(const_np)   # XLA constant: uploaded once per compile

    kernel = functools.partial(hybrid_apa_kernel, N=N, C=C, H=H, W=W)
    out = pl.pallas_call(
        kernel,
        out_shape=jax.ShapeDtypeStruct((K_pad, NC, HW), jnp.float32),
        grid_spec=pltpu.PrefetchScalarGridSpec(
            num_scalar_prefetch=0,
            grid=(K_pad // G,),
            in_specs=[
                pl.BlockSpec((G, NC, HW), lambda k: (k, 0, 0)),
                pl.BlockSpec(const_np.shape, lambda k: (0, 0)),   # resident across grid
                pl.BlockSpec((_DYN_ROWS, cols), lambda k: (0, 0)),
            ],
            out_specs=pl.BlockSpec((G, NC, HW), lambda k: (k, 0, 0)),
        ),
        compiler_params=pltpu.CompilerParams(
            dimension_semantics=("parallel",)),   # v7x: shard samples over 2 TCs
    )(xf, const_arr, dyn)
    return out[:K].reshape(K, N, C, H, W)


@functools.lru_cache(maxsize=None)
def _get_batched_fn(K, N, C, H, W):
    const_np, _ = _const_tile(N, C, H, W)
    G = K if K <= 4 else 4                       # samples per grid step
    K_pad = ((K + G - 1) // G) * G
    return jax.jit(functools.partial(
        _impl, const_np=const_np, N=N, C=C, H=H, W=W, G=G, K_pad=K_pad))


def hybrid_apa_batched(xs, W1, b1, W2, b2, kappa, lam):
    """xs: (K, N, C, H, W) — K independent activation tensors, one pallas_call."""
    K, N, C, H, W = xs.shape
    assert W == 3 and H == C, (
        "HybridAPA.forward's hinge broadcast only works for W == 3 and H == C")
    # The PyTorch `.squeeze()` keeps N hinge terms only when N > 1 and C > 1.
    assert N > 1 and C > 1, "squeeze() changes the hinge loop count for N==1 or C==1"
    return _get_batched_fn(int(K), int(N), int(C), int(H), int(W))(
        xs, W1, b1, W2, b2, kappa, lam)


def hybrid_apa(x, W1, b1, W2, b2, kappa, lam):
    """Single tensor (N, C, H, W)."""
    return hybrid_apa_batched(x[None], W1, b1, W2, b2, kappa, lam)[0]


# --------------------------------------------------------------------------
# pure-JAX reference (mirrors the PyTorch forward) + demo
# --------------------------------------------------------------------------

def reference(x, W1, b1, W2, b2, kappa, lam):
    fft = jnp.fft.rfft2(x, norm='ortho')
    mag = jnp.mean(jnp.abs(fft), axis=(2, 3))                      # (N, C)
    h = jnp.maximum(mag[..., None] @ W1.T + b1, 0.0)               # (N, C, 16)
    hinges = jnp.squeeze(h @ W2.T + b2)                            # (N, C, 3)
    apa = jnp.power(lam * jnp.exp(-kappa * x) + 1.0, -1.0 / lam)
    pw = 0.0
    for m in range(hinges.shape[0]):
        pw = pw + jnp.maximum(x - hinges[m], 0.0)
    return apa + pw


if __name__ == "__main__":
    key = jax.random.PRNGKey(0)
    kx, kb, k1, k2, k3, k4 = jax.random.split(key, 6)

    # small shapes consistent with the forward's broadcasting: W == 3, H == C
    N, C, H, W = 2, 4, 4, 3
    x = jax.random.normal(kx, (N, C, H, W), dtype=jnp.float32)

    # fft_adapter parameters (PyTorch default-init-style uniform bounds)
    W1 = jax.random.uniform(k1, (16, 1), minval=-1.0, maxval=1.0, dtype=jnp.float32)
    b1 = jax.random.uniform(k2, (16,), minval=-1.0, maxval=1.0, dtype=jnp.float32)
    W2 = jax.random.uniform(k3, (3, 16), minval=-0.25, maxval=0.25, dtype=jnp.float32)
    b2 = jax.random.uniform(k4, (3,), minval=-0.25, maxval=0.25, dtype=jnp.float32)
    kappa = jnp.ones((1,), jnp.float32)          # nn.Parameter(torch.ones(1))
    lam = jnp.ones((1,), jnp.float32)

    # single-tensor path
    out = jax.block_until_ready(hybrid_apa(x, W1, b1, W2, b2, kappa, lam))
    ref = jax.block_until_ready(reference(x, W1, b1, W2, b2, kappa, lam))
    assert out.shape == (N, C, H, W)
    np.testing.assert_allclose(np.asarray(out), np.asarray(ref), rtol=1e-4, atol=1e-4)

    # batched path: K independent activation tensors in one gridded pallas_call
    K = 8
    xs = jax.random.normal(kb, (K, N, C, H, W), dtype=jnp.float32)
    outs = jax.block_until_ready(hybrid_apa_batched(xs, W1, b1, W2, b2, kappa, lam))
    refs = jnp.stack([reference(xs[i], W1, b1, W2, b2, kappa, lam) for i in range(K)])
    np.testing.assert_allclose(np.asarray(outs), np.asarray(refs), rtol=1e-4, atol=1e-4)

    print("KERNEL_OK")
</pallas_src>

<mosaic_0001>
module attributes {stable_mosaic.version = 11 : i64} {
  func.func @hybrid_apa_kernel(%arg0: i32, %arg1: memref<1x8x12xf32, #tpu.memory_space<vmem>>, %arg2: memref<32x16xf32, #tpu.memory_space<vmem>>, %arg3: memref<24x16xf32, #tpu.memory_space<vmem>>, %arg4: memref<1x8x12xf32, #tpu.memory_space<vmem>>) attributes {dimension_semantics = [#tpu.dimension_semantics<parallel>], iteration_bounds = array<i64: 1>, scalar_prefetch = 0 : i64, scratch_operands = 0 : i64, tpu.core_type = #tpu.core_type<tc>, window_params = [{transform_indices = @transform_0, window_bounds = array<i64: 1, 8, 12>}, {pipeline_mode = #tpu.pipeline_mode<synchronous>, transform_indices = @transform_1, window_bounds = array<i64: 32, 16>}, {pipeline_mode = #tpu.pipeline_mode<synchronous>, transform_indices = @transform_2, window_bounds = array<i64: 24, 16>}, {transform_indices = @transform_3, window_bounds = array<i64: 1, 8, 12>}]} {
    %c0 = arith.constant 0 : index
    %c0_0 = arith.constant 0 : index
    %c0_1 = arith.constant 0 : index
    %0 = vector.load %arg1[%c0, %c0_0, %c0_1] : memref<1x8x12xf32, #tpu.memory_space<vmem>>, vector<1x8x12xf32>
    %c16 = arith.constant 16 : index
    %c0_2 = arith.constant 0 : index
    %1 = vector.load %arg3[%c16, %c0_2] : memref<24x16xf32, #tpu.memory_space<vmem>>, vector<1x16xf32>
    %c17 = arith.constant 17 : index
    %c0_3 = arith.constant 0 : index
    %2 = vector.load %arg3[%c17, %c0_3] : memref<24x16xf32, #tpu.memory_space<vmem>>, vector<1x16xf32>
    %c18 = arith.constant 18 : index
    %c0_4 = arith.constant 0 : index
    %3 = vector.load %arg3[%c18, %c0_4] : memref<24x16xf32, #tpu.memory_space<vmem>>, vector<1x12xf32>
    %c19 = arith.constant 19 : index
    %c0_5 = arith.constant 0 : index
    %4 = vector.load %arg3[%c19, %c0_5] : memref<24x16xf32, #tpu.memory_space<vmem>>, vector<1x1xf32>
    %c19_6 = arith.constant 19 : index
    %c1 = arith.constant 1 : index
    %5 = vector.load %arg3[%c19_6, %c1] : memref<24x16xf32, #tpu.memory_space<vmem>>, vector<1x1xf32>
    %cst = arith.constant 0.000000e+00 : f32
    %6 = vector.broadcast %cst : f32 to vector<1x8x16xf32>
    %7 = vector.extract_strided_slice %0 {offsets = [0, 0, 0], sizes = [1, 8, 1], strides = [1, 1, 1]} : vector<1x8x12xf32> to vector<1x8x1xf32>
    %c0_7 = arith.constant 0 : index
    %c0_8 = arith.constant 0 : index
    %8 = vector.load %arg2[%c0_7, %c0_8] : memref<32x16xf32, #tpu.memory_space<vmem>>, vector<1x16xf32>
    %9 = vector.shape_cast %8 : vector<1x16xf32> to vector<1x1x16xf32>
    %10 = vector.broadcast %7 : vector<1x8x1xf32> to vector<1x8x16xf32>
    %11 = vector.broadcast %9 : vector<1x1x16xf32> to vector<1x8x16xf32>
    %12 = arith.mulf %10, %11 : vector<1x8x16xf32>
    %13 = arith.addf %6, %12 : vector<1x8x16xf32>
    %14 = vector.extract_strided_slice %0 {offsets = [0, 0, 1], sizes = [1, 8, 1], strides = [1, 1, 1]} : vector<1x8x12xf32> to vector<1x8x1xf32>
    %c1_9 = arith.constant 1 : index
    %c0_10 = arith.constant 0 : index
    %15 = vector.load %arg2[%c1_9, %c0_10] : memref<32x16xf32, #tpu.memory_space<vmem>>, vector<1x16xf32>
    %16 = vector.shape_cast %15 : vector<1x16xf32> to vector<1x1x16xf32>
    %17 = vector.broadcast %14 : vector<1x8x1xf32> to vector<1x8x16xf32>
    %18 = vector.broadcast %16 : vector<1x1x16xf32> to vector<1x8x16xf32>
    %19 = arith.mulf %17, %18 : vector<1x8x16xf32>
    %20 = arith.addf %13, %19 : vector<1x8x16xf32>
    %21 = vector.extract_strided_slice %0 {offsets = [0, 0, 2], sizes = [1, 8, 1], strides = [1, 1, 1]} : vector<1x8x12xf32> to vector<1x8x1xf32>
    %c2 = arith.constant 2 : index
    %c0_11 = arith.constant 0 : index
    %22 = vector.load %arg2[%c2, %c0_11] : memref<32x16xf32, #tpu.memory_space<vmem>>, vector<1x16xf32>
    %23 = vector.shape_cast %22 : vector<1x16xf32> to vector<1x1x16xf32>
    %24 = vector.broadcast %21 : vector<1x8x1xf32> to vector<1x8x16xf32>
    %25 = vector.broadcast %23 : vector<1x1x16xf32> to vector<1x8x16xf32>
    %26 = arith.mulf %24, %25 : vector<1x8x16xf32>
    %27 = arith.addf %20, %26 : vector<1x8x16xf32>
    %28 = vector.extract_strided_slice %0 {offsets = [0, 0, 3], sizes = [1, 8, 1], strides = [1, 1, 1]} : vector<1x8x12xf32> to vector<1x8x1xf32>
    %c3 = arith.constant 3 : index
    %c0_12 = arith.constant 0 : index
    %29 = vector.load %arg2[%c3, %c0_12] : memref<32x16xf32, #tpu.memory_space<vmem>>, vector<1x16xf32>
    %30 = vector.shape_cast %29 : vector<1x16xf32> to vector<1x1x16xf32>
    %31 = vector.broadcast %28 : vector<1x8x1xf32> to vector<1x8x16xf32>
    %32 = vector.broadcast %30 : vector<1x1x16xf32> to vector<1x8x16xf32>
    %33 = arith.mulf %31, %32 : vector<1x8x16xf32>
    %34 = arith.addf %27, %33 : vector<1x8x16xf32>
    %35 = vector.extract_strided_slice %0 {offsets = [0, 0, 4], sizes = [1, 8, 1], strides = [1, 1, 1]} : vector<1x8x12xf32> to vector<1x8x1xf32>
    %c4 = arith.constant 4 : index
    %c0_13 = arith.constant 0 : index
    %36 = vector.load %arg2[%c4, %c0_13] : memref<32x16xf32, #tpu.memory_space<vmem>>, vector<1x16xf32>
    %37 = vector.shape_cast %36 : vector<1x16xf32> to vector<1x1x16xf32>
    %38 = vector.broadcast %35 : vector<1x8x1xf32> to vector<1x8x16xf32>
    %39 = vector.broadcast %37 : vector<1x1x16xf32> to vector<1x8x16xf32>
    %40 = arith.mulf %38, %39 : vector<1x8x16xf32>
    %41 = arith.addf %34, %40 : vector<1x8x16xf32>
    %42 = vector.extract_strided_slice %0 {offsets = [0, 0, 5], sizes = [1, 8, 1], strides = [1, 1, 1]} : vector<1x8x12xf32> to vector<1x8x1xf32>
    %c5 = arith.constant 5 : index
    %c0_14 = arith.constant 0 : index
    %43 = vector.load %arg2[%c5, %c0_14] : memref<32x16xf32, #tpu.memory_space<vmem>>, vector<1x16xf32>
    %44 = vector.shape_cast %43 : vector<1x16xf32> to vector<1x1x16xf32>
    %45 = vector.broadcast %42 : vector<1x8x1xf32> to vector<1x8x16xf32>
    %46 = vector.broadcast %44 : vector<1x1x16xf32> to vector<1x8x16xf32>
    %47 = arith.mulf %45, %46 : vector<1x8x16xf32>
    %48 = arith.addf %41, %47 : vector<1x8x16xf32>
    %49 = vector.extract_strided_slice %0 {offsets = [0, 0, 6], sizes = [1, 8, 1], strides = [1, 1, 1]} : vector<1x8x12xf32> to vector<1x8x1xf32>
    %c6 = arith.constant 6 : index
    %c0_15 = arith.constant 0 : index
    %50 = vector.load %arg2[%c6, %c0_15] : memref<32x16xf32, #tpu.memory_space<vmem>>, vector<1x16xf32>
    %51 = vector.shape_cast %50 : vector<1x16xf32> to vector<1x1x16xf32>
    %52 = vector.broadcast %49 : vector<1x8x1xf32> to vector<1x8x16xf32>
    %53 = vector.broadcast %51 : vector<1x1x16xf32> to vector<1x8x16xf32>
    %54 = arith.mulf %52, %53 : vector<1x8x16xf32>
    %55 = arith.addf %48, %54 : vector<1x8x16xf32>
    %56 = vector.extract_strided_slice %0 {offsets = [0, 0, 7], sizes = [1, 8, 1], strides = [1, 1, 1]} : vector<1x8x12xf32> to vector<1x8x1xf32>
    %c7 = arith.constant 7 : index
    %c0_16 = arith.constant 0 : index
    %57 = vector.load %arg2[%c7, %c0_16] : memref<32x16xf32, #tpu.memory_space<vmem>>, vector<1x16xf32>
    %58 = vector.shape_cast %57 : vector<1x16xf32> to vector<1x1x16xf32>
    %59 = vector.broadcast %56 : vector<1x8x1xf32> to vector<1x8x16xf32>
    %60 = vector.broadcast %58 : vector<1x1x16xf32> to vector<1x8x16xf32>
    %61 = arith.mulf %59, %60 : vector<1x8x16xf32>
    %62 = arith.addf %55, %61 : vector<1x8x16xf32>
    %63 = vector.extract_strided_slice %0 {offsets = [0, 0, 8], sizes = [1, 8, 1], strides = [1, 1, 1]} : vector<1x8x12xf32> to vector<1x8x1xf32>
    %c8 = arith.constant 8 : index
    %c0_17 = arith.constant 0 : index
    %64 = vector.load %arg2[%c8, %c0_17] : memref<32x16xf32, #tpu.memory_space<vmem>>, vector<1x16xf32>
    %65 = vector.shape_cast %64 : vector<1x16xf32> to vector<1x1x16xf32>
    %66 = vector.broadcast %63 : vector<1x8x1xf32> to vector<1x8x16xf32>
    %67 = vector.broadcast %65 : vector<1x1x16xf32> to vector<1x8x16xf32>
    %68 = arith.mulf %66, %67 : vector<1x8x16xf32>
    %69 = arith.addf %62, %68 : vector<1x8x16xf32>
    %70 = vector.extract_strided_slice %0 {offsets = [0, 0, 9], sizes = [1, 8, 1], strides = [1, 1, 1]} : vector<1x8x12xf32> to vector<1x8x1xf32>
    %c9 = arith.constant 9 : index
    %c0_18 = arith.constant 0 : index
    %71 = vector.load %arg2[%c9, %c0_18] : memref<32x16xf32, #tpu.memory_space<vmem>>, vector<1x16xf32>
    %72 = vector.shape_cast %71 : vector<1x16xf32> to vector<1x1x16xf32>
    %73 = vector.broadcast %70 : vector<1x8x1xf32> to vector<1x8x16xf32>
    %74 = vector.broadcast %72 : vector<1x1x16xf32> to vector<1x8x16xf32>
    %75 = arith.mulf %73, %74 : vector<1x8x16xf32>
    %76 = arith.addf %69, %75 : vector<1x8x16xf32>
    %77 = vector.extract_strided_slice %0 {offsets = [0, 0, 10], sizes = [1, 8, 1], strides = [1, 1, 1]} : vector<1x8x12xf32> to vector<1x8x1xf32>
    %c10 = arith.constant 10 : index
    %c0_19 = arith.constant 0 : index
    %78 = vector.load %arg2[%c10, %c0_19] : memref<32x16xf32, #tpu.memory_space<vmem>>, vector<1x16xf32>
    %79 = vector.shape_cast %78 : vector<1x16xf32> to vector<1x1x16xf32>
    %80 = vector.broadcast %77 : vector<1x8x1xf32> to vector<1x8x16xf32>
    %81 = vector.broadcast %79 : vector<1x1x16xf32> to vector<1x8x16xf32>
    %82 = arith.mulf %80, %81 : vector<1x8x16xf32>
    %83 = arith.addf %76, %82 : vector<1x8x16xf32>
    %84 = vector.extract_strided_slice %0 {offsets = [0, 0, 11], sizes = [1, 8, 1], strides = [1, 1, 1]} : vector<1x8x12xf32> to vector<1x8x1xf32>
    %c11 = arith.constant 11 : index
    %c0_20 = arith.constant 0 : index
    %85 = vector.load %arg2[%c11, %c0_20] : memref<32x16xf32, #tpu.memory_space<vmem>>, vector<1x16xf32>
    %86 = vector.shape_cast %85 : vector<1x16xf32> to vector<1x1x16xf32>
    %87 = vector.broadcast %84 : vector<1x8x1xf32> to vector<1x8x16xf32>
    %88 = vector.broadcast %86 : vector<1x1x16xf32> to vector<1x8x16xf32>
    %89 = arith.mulf %87, %88 : vector<1x8x16xf32>
    %90 = arith.addf %83, %89 : vector<1x8x16xf32>
    %91 = vector.extract_strided_slice %90 {offsets = [0, 0, 0], sizes = [1, 8, 8], strides = [1, 1, 1]} : vector<1x8x16xf32> to vector<1x8x8xf32>
    %92 = vector.extract_strided_slice %90 {offsets = [0, 0, 8], sizes = [1, 8, 8], strides = [1, 1, 1]} : vector<1x8x16xf32> to vector<1x8x8xf32>
    %93 = arith.mulf %91, %91 : vector<1x8x8xf32>
    %94 = arith.mulf %92, %92 : vector<1x8x8xf32>
    %95 = arith.addf %93, %94 : vector<1x8x8xf32>
    %96 = math.sqrt %95 : vector<1x8x8xf32>
    %cst_21 = arith.constant dense<0.000000e+00> : vector<1x8xf32>
    %97 = vector.multi_reduction <add>, %96, %cst_21 [2] : vector<1x8x8xf32> to vector<1x8xf32>
    %98 = vector.shape_cast %97 : vector<1x8xf32> to vector<1x8x1xf32>
    %cst_22 = arith.constant 8.000000e+00 : f32
    %99 = vector.broadcast %cst_22 : f32 to vector<1x8x1xf32>
    %100 = arith.divf %98, %99 : vector<1x8x1xf32>
    %101 = vector.shape_cast %1 : vector<1x16xf32> to vector<1x1x16xf32>
    %102 = vector.broadcast %100 : vector<1x8x1xf32> to vector<1x8x16xf32>
    %103 = vector.broadcast %101 : vector<1x1x16xf32> to vector<1x8x16xf32>
    %104 = arith.mulf %102, %103 : vector<1x8x16xf32>
    %105 = vector.shape_cast %2 : vector<1x16xf32> to vector<1x1x16xf32>
    %106 = vector.broadcast %105 : vector<1x1x16xf32> to vector<1x8x16xf32>
    %107 = arith.addf %104, %106 : vector<1x8x16xf32>
    %cst_23 = arith.constant 0.000000e+00 : f32
    %108 = vector.broadcast %cst_23 : f32 to vector<1x8x16xf32>
    %109 = arith.maximumf %107, %108 : vector<1x8x16xf32>
    %cst_24 = arith.constant 0.000000e+00 : f32
    %110 = vector.broadcast %cst_24 : f32 to vector<1x8x12xf32>
    %111 = vector.extract_strided_slice %109 {offsets = [0, 0, 0], sizes = [1, 8, 1], strides = [1, 1, 1]} : vector<1x8x16xf32> to vector<1x8x1xf32>
    %c0_25 = arith.constant 0 : index
    %c0_26 = arith.constant 0 : index
    %112 = vector.load %arg3[%c0_25, %c0_26] : memref<24x16xf32, #tpu.memory_space<vmem>>, vector<1x12xf32>
    %113 = vector.shape_cast %112 : vector<1x12xf32> to vector<1x1x12xf32>
    %114 = vector.broadcast %111 : vector<1x8x1xf32> to vector<1x8x12xf32>
    %115 = vector.broadcast %113 : vector<1x1x12xf32> to vector<1x8x12xf32>
    %116 = arith.mulf %114, %115 : vector<1x8x12xf32>
    %117 = arith.addf %110, %116 : vector<1x8x12xf32>
    %118 = vector.extract_strided_slice %109 {offsets = [0, 0, 1], sizes = [1, 8, 1], strides = [1, 1, 1]} : vector<1x8x16xf32> to vector<1x8x1xf32>
    %c1_27 = arith.constant 1 : index
    %c0_28 = arith.constant 0 : index
    %119 = vector.load %arg3[%c1_27, %c0_28] : memref<24x16xf32, #tpu.memory_space<vmem>>, vector<1x12xf32>
    %120 = vector.shape_cast %119 : vector<1x12xf32> to vector<1x1x12xf32>
    %121 = vector.broadcast %118 : vector<1x8x1xf32> to vector<1x8x12xf32>
    %122 = vector.broadcast %120 : vector<1x1x12xf32> to vector<1x8x12xf32>
    %123 = arith.mulf %121, %122 : vector<1x8x12xf32>
    %124 = arith.addf %117, %123 : vector<1x8x12xf32>
    %125 = vector.extract_strided_slice %109 {offsets = [0, 0, 2], sizes = [1, 8, 1], strides = [1, 1, 1]} : vector<1x8x16xf32> to vector<1x8x1xf32>
    %c2_29 = arith.constant 2 : index
    %c0_30 = arith.constant 0 : index
    %126 = vector.load %arg3[%c2_29, %c0_30] : memref<24x16xf32, #tpu.memory_space<vmem>>, vector<1x12xf32>
    %127 = vector.shape_cast %126 : vector<1x12xf32> to vector<1x1x12xf32>
    %128 = vector.broadcast %125 : vector<1x8x1xf32> to vector<1x8x12xf32>
    %129 = vector.broadcast %127 : vector<1x1x12xf32> to vector<1x8x12xf32>
    %130 = arith.mulf %128, %129 : vector<1x8x12xf32>
    %131 = arith.addf %124, %130 : vector<1x8x12xf32>
    %132 = vector.extract_strided_slice %109 {offsets = [0, 0, 3], sizes = [1, 8, 1], strides = [1, 1, 1]} : vector<1x8x16xf32> to vector<1x8x1xf32>
    %c3_31 = arith.constant 3 : index
    %c0_32 = arith.constant 0 : index
    %133 = vector.load %arg3[%c3_31, %c0_32] : memref<24x16xf32, #tpu.memory_space<vmem>>, vector<1x12xf32>
    %134 = vector.shape_cast %133 : vector<1x12xf32> to vector<1x1x12xf32>
    %135 = vector.broadcast %132 : vector<1x8x1xf32> to vector<1x8x12xf32>
    %136 = vector.broadcast %134 : vector<1x1x12xf32> to vector<1x8x12xf32>
    %137 = arith.mulf %135, %136 : vector<1x8x12xf32>
    %138 = arith.addf %131, %137 : vector<1x8x12xf32>
    %139 = vector.extract_strided_slice %109 {offsets = [0, 0, 4], sizes = [1, 8, 1], strides = [1, 1, 1]} : vector<1x8x16xf32> to vector<1x8x1xf32>
    %c4_33 = arith.constant 4 : index
    %c0_34 = arith.constant 0 : index
    %140 = vector.load %arg3[%c4_33, %c0_34] : memref<24x16xf32, #tpu.memory_space<vmem>>, vector<1x12xf32>
    %141 = vector.shape_cast %140 : vector<1x12xf32> to vector<1x1x12xf32>
    %142 = vector.broadcast %139 : vector<1x8x1xf32> to vector<1x8x12xf32>
    %143 = vector.broadcast %141 : vector<1x1x12xf32> to vector<1x8x12xf32>
    %144 = arith.mulf %142, %143 : vector<1x8x12xf32>
    %145 = arith.addf %138, %144 : vector<1x8x12xf32>
    %146 = vector.extract_strided_slice %109 {offsets = [0, 0, 5], sizes = [1, 8, 1], strides = [1, 1, 1]} : vector<1x8x16xf32> to vector<1x8x1xf32>
    %c5_35 = arith.constant 5 : index
    %c0_36 = arith.constant 0 : index
    %147 = vector.load %arg3[%c5_35, %c0_36] : memref<24x16xf32, #tpu.memory_space<vmem>>, vector<1x12xf32>
    %148 = vector.shape_cast %147 : vector<1x12xf32> to vector<1x1x12xf32>
    %149 = vector.broadcast %146 : vector<1x8x1xf32> to vector<1x8x12xf32>
    %150 = vector.broadcast %148 : vector<1x1x12xf32> to vector<1x8x12xf32>
    %151 = arith.mulf %149, %150 : vector<1x8x12xf32>
    %152 = arith.addf %145, %151 : vector<1x8x12xf32>
    %153 = vector.extract_strided_slice %109 {offsets = [0, 0, 6], sizes = [1, 8, 1], strides = [1, 1, 1]} : vector<1x8x16xf32> to vector<1x8x1xf32>
    %c6_37 = arith.constant 6 : index
    %c0_38 = arith.constant 0 : index
    %154 = vector.load %arg3[%c6_37, %c0_38] : memref<24x16xf32, #tpu.memory_space<vmem>>, vector<1x12xf32>
    %155 = vector.shape_cast %154 : vector<1x12xf32> to vector<1x1x12xf32>
    %156 = vector.broadcast %153 : vector<1x8x1xf32> to vector<1x8x12xf32>
    %157 = vector.broadcast %155 : vector<1x1x12xf32> to vector<1x8x12xf32>
    %158 = arith.mulf %156, %157 : vector<1x8x12xf32>
    %159 = arith.addf %152, %158 : vector<1x8x12xf32>
    %160 = vector.extract_strided_slice %109 {offsets = [0, 0, 7], sizes = [1, 8, 1], strides = [1, 1, 1]} : vector<1x8x16xf32> to vector<1x8x1xf32>
    %c7_39 = arith.constant 7 : index
    %c0_40 = arith.constant 0 : index
    %161 = vector.load %arg3[%c7_39, %c0_40] : memref<24x16xf32, #tpu.memory_space<vmem>>, vector<1x12xf32>
    %162 = vector.shape_cast %161 : vector<1x12xf32> to vector<1x1x12xf32>
    %163 = vector.broadcast %160 : vector<1x8x1xf32> to vector<1x8x12xf32>
    %164 = vector.broadcast %162 : vector<1x1x12xf32> to vector<1x8x12xf32>
    %165 = arith.mulf %163, %164 : vector<1x8x12xf32>
    %166 = arith.addf %159, %165 : vector<1x8x12xf32>
    %167 = vector.extract_strided_slice %109 {offsets = [0, 0, 8], sizes = [1, 8, 1], strides = [1, 1, 1]} : vector<1x8x16xf32> to vector<1x8x1xf32>
    %c8_41 = arith.constant 8 : index
    %c0_42 = arith.constant 0 : index
    %168 = vector.load %arg3[%c8_41, %c0_42] : memref<24x16xf32, #tpu.memory_space<vmem>>, vector<1x12xf32>
    %169 = vector.shape_cast %168 : vector<1x12xf32> to vector<1x1x12xf32>
    %170 = vector.broadcast %167 : vector<1x8x1xf32> to vector<1x8x12xf32>
    %171 = vector.broadcast %169 : vector<1x1x12xf32> to vector<1x8x12xf32>
    %172 = arith.mulf %170, %171 : vector<1x8x12xf32>
    %173 = arith.addf %166, %172 : vector<1x8x12xf32>
    %174 = vector.extract_strided_slice %109 {offsets = [0, 0, 9], sizes = [1, 8, 1], strides = [1, 1, 1]} : vector<1x8x16xf32> to vector<1x8x1xf32>
    %c9_43 = arith.constant 9 : index
    %c0_44 = arith.constant 0 : index
    %175 = vector.load %arg3[%c9_43, %c0_44] : memref<24x16xf32, #tpu.memory_space<vmem>>, vector<1x12xf32>
    %176 = vector.shape_cast %175 : vector<1x12xf32> to vector<1x1x12xf32>
    %177 = vector.broadcast %174 : vector<1x8x1xf32> to vector<1x8x12xf32>
    %178 = vector.broadcast %176 : vector<1x1x12xf32> to vector<1x8x12xf32>
    %179 = arith.mulf %177, %178 : vector<1x8x12xf32>
    %180 = arith.addf %173, %179 : vector<1x8x12xf32>
    %181 = vector.extract_strided_slice %109 {offsets = [0, 0, 10], sizes = [1, 8, 1], strides = [1, 1, 1]} : vector<1x8x16xf32> to vector<1x8x1xf32>
    %c10_45 = arith.constant 10 : index
    %c0_46 = arith.constant 0 : index
    %182 = vector.load %arg3[%c10_45, %c0_46] : memref<24x16xf32, #tpu.memory_space<vmem>>, vector<1x12xf32>
    %183 = vector.shape_cast %182 : vector<1x12xf32> to vector<1x1x12xf32>
    %184 = vector.broadcast %181 : vector<1x8x1xf32> to vector<1x8x12xf32>
    %185 = vector.broadcast %183 : vector<1x1x12xf32> to vector<1x8x12xf32>
    %186 = arith.mulf %184, %185 : vector<1x8x12xf32>
    %187 = arith.addf %180, %186 : vector<1x8x12xf32>
    %188 = vector.extract_strided_slice %109 {offsets = [0, 0, 11], sizes = [1, 8, 1], strides = [1, 1, 1]} : vector<1x8x16xf32> to vector<1x8x1xf32>
    %c11_47 = arith.constant 11 : index
    %c0_48 = arith.constant 0 : index
    %189 = vector.load %arg3[%c11_47, %c0_48] : memref<24x16xf32, #tpu.memory_space<vmem>>, vector<1x12xf32>
    %190 = vector.shape_cast %189 : vector<1x12xf32> to vector<1x1x12xf32>
    %191 = vector.broadcast %188 : vector<1x8x1xf32> to vector<1x8x12xf32>
    %192 = vector.broadcast %190 : vector<1x1x12xf32> to vector<1x8x12xf32>
    %193 = arith.mulf %191, %192 : vector<1x8x12xf32>
    %194 = arith.addf %187, %193 : vector<1x8x12xf32>
    %195 = vector.extract_strided_slice %109 {offsets = [0, 0, 12], sizes = [1, 8, 1], strides = [1, 1, 1]} : vector<1x8x16xf32> to vector<1x8x1xf32>
    %c12 = arith.constant 12 : index
    %c0_49 = arith.constant 0 : index
    %196 = vector.load %arg3[%c12, %c0_49] : memref<24x16xf32, #tpu.memory_space<vmem>>, vector<1x12xf32>
    %197 = vector.shape_cast %196 : vector<1x12xf32> to vector<1x1x12xf32>
    %198 = vector.broadcast %195 : vector<1x8x1xf32> to vector<1x8x12xf32>
    %199 = vector.broadcast %197 : vector<1x1x12xf32> to vector<1x8x12xf32>
    %200 = arith.mulf %198, %199 : vector<1x8x12xf32>
    %201 = arith.addf %194, %200 : vector<1x8x12xf32>
    %202 = vector.extract_strided_slice %109 {offsets = [0, 0, 13], sizes = [1, 8, 1], strides = [1, 1, 1]} : vector<1x8x16xf32> to vector<1x8x1xf32>
    %c13 = arith.constant 13 : index
    %c0_50 = arith.constant 0 : index
    %203 = vector.load %arg3[%c13, %c0_50] : memref<24x16xf32, #tpu.memory_space<vmem>>, vector<1x12xf32>
    %204 = vector.shape_cast %203 : vector<1x12xf32> to vector<1x1x12xf32>
    %205 = vector.broadcast %202 : vector<1x8x1xf32> to vector<1x8x12xf32>
    %206 = vector.broadcast %204 : vector<1x1x12xf32> to vector<1x8x12xf32>
    %207 = arith.mulf %205, %206 : vector<1x8x12xf32>
    %208 = arith.addf %201, %207 : vector<1x8x12xf32>
    %209 = vector.extract_strided_slice %109 {offsets = [0, 0, 14], sizes = [1, 8, 1], strides = [1, 1, 1]} : vector<1x8x16xf32> to vector<1x8x1xf32>
    %c14 = arith.constant 14 : index
    %c0_51 = arith.constant 0 : index
    %210 = vector.load %arg3[%c14, %c0_51] : memref<24x16xf32, #tpu.memory_space<vmem>>, vector<1x12xf32>
    %211 = vector.shape_cast %210 : vector<1x12xf32> to vector<1x1x12xf32>
    %212 = vector.broadcast %209 : vector<1x8x1xf32> to vector<1x8x12xf32>
    %213 = vector.broadcast %211 : vector<1x1x12xf32> to vector<1x8x12xf32>
    %214 = arith.mulf %212, %213 : vector<1x8x12xf32>
    %215 = arith.addf %208, %214 : vector<1x8x12xf32>
    %216 = vector.extract_strided_slice %109 {offsets = [0, 0, 15], sizes = [1, 8, 1], strides = [1, 1, 1]} : vector<1x8x16xf32> to vector<1x8x1xf32>
    %c15 = arith.constant 15 : index
    %c0_52 = arith.constant 0 : index
    %217 = vector.load %arg3[%c15, %c0_52] : memref<24x16xf32, #tpu.memory_space<vmem>>, vector<1x12xf32>
    %218 = vector.shape_cast %217 : vector<1x12xf32> to vector<1x1x12xf32>
    %219 = vector.broadcast %216 : vector<1x8x1xf32> to vector<1x8x12xf32>
    %220 = vector.broadcast %218 : vector<1x1x12xf32> to vector<1x8x12xf32>
    %221 = arith.mulf %219, %220 : vector<1x8x12xf32>
    %222 = arith.addf %215, %221 : vector<1x8x12xf32>
    %223 = vector.shape_cast %3 : vector<1x12xf32> to vector<1x1x12xf32>
    %224 = vector.broadcast %223 : vector<1x1x12xf32> to vector<1x8x12xf32>
    %225 = arith.addf %222, %224 : vector<1x8x12xf32>
    %cst_53 = arith.constant 0.000000e+00 : f32
    %226 = vector.broadcast %cst_53 : f32 to vector<1x1xf32>
    %227 = arith.subf %226, %4 : vector<1x1xf32>
    %228 = vector.shape_cast %227 : vector<1x1xf32> to vector<1x1x1xf32>
    %229 = vector.broadcast %228 : vector<1x1x1xf32> to vector<1x8x12xf32>
    %230 = arith.mulf %229, %0 : vector<1x8x12xf32>
    %231 = math.exp %230 : vector<1x8x12xf32>
    %232 = vector.shape_cast %5 : vector<1x1xf32> to vector<1x1x1xf32>
    %233 = vector.broadcast %232 : vector<1x1x1xf32> to vector<1x8x12xf32>
    %234 = arith.mulf %233, %231 : vector<1x8x12xf32>
    %cst_54 = arith.constant 1.000000e+00 : f32
    %235 = vector.broadcast %cst_54 : f32 to vector<1x8x12xf32>
    %236 = arith.addf %234, %235 : vector<1x8x12xf32>
    %cst_55 = arith.constant -1.000000e+00 : f32
    %237 = vector.broadcast %cst_55 : f32 to vector<1x1xf32>
    %238 = arith.divf %237, %5 : vector<1x1xf32>
    %239 = math.log %236 : vector<1x8x12xf32>
    %240 = vector.shape_cast %238 : vector<1x1xf32> to vector<1x1x1xf32>
    %241 = vector.broadcast %240 : vector<1x1x1xf32> to vector<1x8x12xf32>
    %242 = arith.mulf %241, %239 : vector<1x8x12xf32>
    %243 = math.exp %242 : vector<1x8x12xf32>
    %cst_56 = arith.constant 0.000000e+00 : f32
    %244 = vector.broadcast %cst_56 : f32 to vector<1x8x12xf32>
    %c16_57 = arith.constant 16 : index
    %c0_58 = arith.constant 0 : index
    %245 = vector.load %arg2[%c16_57, %c0_58] : memref<32x16xf32, #tpu.memory_space<vmem>>, vector<8x12xf32>
    %246 = vector.shape_cast %245 : vector<8x12xf32> to vector<1x8x12xf32>
    %247 = arith.mulf %246, %225 : vector<1x8x12xf32>
    %cst_59 = arith.constant dense<0.000000e+00> : vector<1x12xf32>
    %248 = vector.multi_reduction <add>, %247, %cst_59 [1] : vector<1x8x12xf32> to vector<1x12xf32>
    %249 = vector.shape_cast %248 : vector<1x12xf32> to vector<1x1x12xf32>
    %250 = vector.broadcast %249 : vector<1x1x12xf32> to vector<1x8x12xf32>
    %251 = arith.subf %0, %250 : vector<1x8x12xf32>
    %cst_60 = arith.constant 0.000000e+00 : f32
    %252 = vector.broadcast %cst_60 : f32 to vector<1x8x12xf32>
    %253 = arith.maximumf %251, %252 : vector<1x8x12xf32>
    %254 = arith.addf %244, %253 : vector<1x8x12xf32>
    %c24 = arith.constant 24 : index
    %c0_61 = arith.constant 0 : index
    %255 = vector.load %arg2[%c24, %c0_61] : memref<32x16xf32, #tpu.memory_space<vmem>>, vector<8x12xf32>
    %256 = vector.shape_cast %255 : vector<8x12xf32> to vector<1x8x12xf32>
    %257 = arith.mulf %256, %225 : vector<1x8x12xf32>
    %cst_62 = arith.constant dense<0.000000e+00> : vector<1x12xf32>
    %258 = vector.multi_reduction <add>, %257, %cst_62 [1] : vector<1x8x12xf32> to vector<1x12xf32>
    %259 = vector.shape_cast %258 : vector<1x12xf32> to vector<1x1x12xf32>
    %260 = vector.broadcast %259 : vector<1x1x12xf32> to vector<1x8x12xf32>
    %261 = arith.subf %0, %260 : vector<1x8x12xf32>
    %cst_63 = arith.constant 0.000000e+00 : f32
    %262 = vector.broadcast %cst_63 : f32 to vector<1x8x12xf32>
    %263 = arith.maximumf %261, %262 : vector<1x8x12xf32>
    %264 = arith.addf %254, %263 : vector<1x8x12xf32>
    %265 = arith.addf %243, %264 : vector<1x8x12xf32>
    %c0_64 = arith.constant 0 : index
    %c0_65 = arith.constant 0 : index
    %c0_66 = arith.constant 0 : index
    %266 = vector.load %arg4[%c0_64, %c0_65, %c0_66] : memref<1x8x12xf32, #tpu.memory_space<vmem>>, vector<1x8x12xf32>
    tpu.vector_store %arg4[%c0_64, %c0_65, %c0_66], %265 {strides = array<i32>} : memref<1x8x12xf32, #tpu.memory_space<vmem>>, vector<1x8x12xf32>,
    return
  }
  func.func @transform_0(%arg0: i32) -> (i32, i32, i32) {
    %c0_i32 = arith.constant 0 : i32
    %c0_i32_0 = arith.constant 0 : i32
    %c0_i32_1 = arith.constant 0 : i32
    return %arg0, %c0_i32, %c0_i32_0 : i32, i32, i32
  }
  func.func @transform_1(%arg0: i32) -> (i32, i32) {
    %c0_i32 = arith.constant 0 : i32
    %c0_i32_0 = arith.constant 0 : i32
    %c0_i32_1 = arith.constant 0 : i32
    return %c0_i32, %c0_i32_0 : i32, i32
  }
  func.func @transform_2(%arg0: i32) -> (i32, i32) {
    %c0_i32 = arith.constant 0 : i32
    %c0_i32_0 = arith.constant 0 : i32
    %c0_i32_1 = arith.constant 0 : i32
    return %c0_i32, %c0_i32_0 : i32, i32
  }
  func.func @transform_3(%arg0: i32) -> (i32, i32, i32) {
    %c0_i32 = arith.constant 0 : i32
    %c0_i32_0 = arith.constant 0 : i32
    %c0_i32_1 = arith.constant 0 : i32
    return %arg0, %c0_i32, %c0_i32_0 : i32, i32, i32
  }
}

</mosaic_0001>

<llo_original>
// kernel: tile.13
$region0: #{tile.13}
  %s0 = inlined_call_operand.vmem [shape: f32[16,4,3], index: 0, kind: input, shape index: {}]
  %s1 = inlined_call_operand.vmem [shape: f32[16,12], index: 1, kind: output, shape index: {}]
  $region1: #{tile.13} parent=0
    #allocation0 [shape = 'u8[16384]{0}', space=vmem, size = 0x4000, scoped, tag = 'scoped mem for input reshape']
    %s3 = sshll.u32 1, 4
    %s4 = ssub.s32 %s3, 1
    %s5 = smul.addr 4, 3
    %s6 = scalar_lea.vmem %s0, %s5
    %v7 = vld [vmem:[%s6] sm:%s4]
    %s8 = scalar_lea.vmem [#allocation0], 24
    %9 = vst [vmem:[%s8] sm:%s4] %v7
    %s10 = smul.addr 4, 2
    %s11 = scalar_lea.vmem %s0, %s10
    %v12 = vld [vmem:[%s11] sm:%s4]
    %s13 = scalar_lea.vmem [#allocation0], 16
    %14 = vst [vmem:[%s13] sm:%s4] %v12
    %s15 = scalar_lea.vmem %s0, 4
    %v16 = vld [vmem:[%s15] sm:%s4]
    %s17 = scalar_lea.vmem [#allocation0], 8
    %18 = vst [vmem:[%s17] sm:%s4] %v16
    %v19 = vld [vmem:[%s0] sm:%s4]
    %20 = vst [vmem:[#allocation0] sm:%s4] %v19
    %v21 = vld [vmem:[#allocation0] sm:$0x7]
    %vm22 = vcmask 130048
    %23 = vst.msk [vmem:[%s1] sm:$0x7] %vm22, %v21
    %s24 = scalar_lea.vmem [#allocation0], 8
    %v25 = vld [vmem:[%s24] sm:$0x7]
    %vm26 = vcmask 130048
    %s27 = scalar_lea.vmem %s1, 3
    %28 = vst.msk [vmem:[%s27] sm:$0x7] %vm26, %v25
    %s29 = scalar_lea.vmem [#allocation0], 16
    %v30 = vld [vmem:[%s29] sm:$0x7]
    %vm31 = vcmask 130048
    %s32 = scalar_lea.vmem %s1, 6
    %33 = vst.msk [vmem:[%s32] sm:$0x7] %vm31, %v30
    %s34 = scalar_lea.vmem [#allocation0], 24
    %v35 = vld [vmem:[%s34] sm:$0x7]
    %vm36 = vcmask 130048
    %s37 = scalar_lea.vmem %s1, 9
    %38 = vst.msk [vmem:[%s37] sm:$0x7] %vm36, %v35

// kernel: _impl.1
$region0: #{_impl.1}
  #allocation0 [shape = 'u32[]', space=smem, size = 0x4, offset = 0x4, fixed_abs, tag = 'smem constant byte address 0x4 - core index']
  #allocation1 [shape = 'u32[144,128]{1,0:T(1,128)}', space=vmem, size = 0x12000, scoped, tag = 'internal scratch']
  %s0 = inlined_call_operand.vmem [shape: f32[1,8,12], index: 0, kind: input, shape index: {}]
  %s1 = inlined_call_operand.vmem [shape: f32[32,16], index: 1, kind: input, shape index: {}]
  %s2 = inlined_call_operand.vmem [shape: f32[24,16], index: 2, kind: input, shape index: {}]
  %s3 = inlined_call_operand.vmem [shape: f32[1,8,12], index: 3, kind: output, shape index: {}]
  %s4 = sld [smem:[#allocation0]]
  $region22: #{_impl.1} parent=0
    _
  %s6 = ssub.s32 1, %s4
  %s7 = scalar_select 0, %s6, %s4
  // Predicated region
  $region2: #{_impl.1} parent=0 // pred_check
    _
  $region3: #{_impl.1} parent=0 // pred_check_branch
    %9 = sbr.rel (0) target = $region5
  $region4: #{_impl.1} parent=0 // pred_region
    _
  $region5: #{_impl.1} parent=0 // pred_fallthru
    _
  // Predicated region
  $region6: #{_impl.1} parent=0 // pred_check
    _
  $region7: #{_impl.1} parent=0 // pred_check_branch
    %11 = sbr.rel (0) target = $region9
  $region8: #{_impl.1} parent=0 // pred_region
    _
  $region9: #{_impl.1} parent=0 // pred_fallthru
    _
  // Predicated region
  $region10: #{_impl.1} parent=0 // pred_check
    _
  $region11: #{_impl.1} parent=0 // pred_check_branch
    %13 = sbr.rel (0) target = $region13
  $region12: #{_impl.1} parent=0 // pred_region
    _
  $region13: #{_impl.1} parent=0 // pred_fallthru
    _
  %v14 = vld [vmem:[%s0] sm:$0xff]
  %v15 = vld [vmem:[%s2 + $0x10] sm:$0x1]
  %v16 = vld [vmem:[%s2 + $0x11] sm:$0x1]
  %v17 = vld [vmem:[%s2 + $0x12] sm:$0x1]
  %v18 = vld [vmem:[%s2 + $0x13] sm:$0x1]
  %v19 = vld [vmem:[%s1] sm:$0x1]
  %21 = vset.pattern.permute.xlu0 0
  %22 = vperm.xlu0 %21, %v14
  %v23 = vpop.permute.xlu0 %22
  %v25 = vlaneseq
  %v26 = vshrl.u32 %v25, 7
  %v27 = vsub.s32 0, %v26
  %v28 = vrot.slane %v19, %v27
  %v29 = vmul.f32 %v23, %v28
  %v30 = vadd.f32 %v29, 0.0
  %v31 = vld [vmem:[%s1 + $0x1] sm:$0x1]
  %32 = vset.pattern.permute.xlu0 1
  %33 = vperm.xlu0 %32, %v14
  %v34 = vpop.permute.xlu0 %33
  %v36 = vlaneseq
  %v37 = vshrl.u32 %v36, 7
  %v38 = vsub.s32 0, %v37
  %v39 = vrot.slane %v31, %v38
  %v40 = vmul.f32 %v34, %v39
  %v41 = vadd.f32 %v30, %v40
  %v42 = vld [vmem:[%s1 + $0x2] sm:$0x1]
  %43 = vset.pattern.permute.xlu0 2
  %44 = vperm.xlu0 %43, %v14
  %v45 = vpop.permute.xlu0 %44
  %v47 = vlaneseq
  %v48 = vshrl.u32 %v47, 7
  %v49 = vsub.s32 0, %v48
  %v50 = vrot.slane %v42, %v49
  %v51 = vmul.f32 %v45, %v50
  %v52 = vadd.f32 %v41, %v51
  %v53 = vld [vmem:[%s1 + $0x3] sm:$0x1]
  %54 = vset.pattern.permute.xlu0 3
  %55 = vperm.xlu0 %54, %v14
  %v56 = vpop.permute.xlu0 %55
  %v58 = vlaneseq
  %v59 = vshrl.u32 %v58, 7
  %v60 = vsub.s32 0, %v59
  %v61 = vrot.slane %v53, %v60
  %v62 = vmul.f32 %v56, %v61
  %v63 = vadd.f32 %v52, %v62
  %v64 = vld [vmem:[%s1 + $0x4] sm:$0x1]
  %65 = vset.pattern.permute.xlu0 4
  %66 = vperm.xlu0 %65, %v14
  %v67 = vpop.permute.xlu0 %66
  %v69 = vlaneseq
  %v70 = vshrl.u32 %v69, 7
  %v71 = vsub.s32 0, %v70
  %v72 = vrot.slane %v64, %v71
  %v73 = vmul.f32 %v67, %v72
  %v74 = vadd.f32 %v63, %v73
  %v75 = vld [vmem:[%s1 + $0x5] sm:$0x1]
  %76 = vset.pattern.permute.xlu0 5
  %77 = vperm.xlu0 %76, %v14
  %v78 = vpop.permute.xlu0 %77
  %v80 = vlaneseq
  %v81 = vshrl.u32 %v80, 7
  %v82 = vsub.s32 0, %v81
  %v83 = vrot.slane %v75, %v82
  %v84 = vmul.f32 %v78, %v83
  %v85 = vadd.f32 %v74, %v84
  %v86 = vld [vmem:[%s1 + $0x6] sm:$0x1]
  %87 = vset.pattern.permute.xlu0 6
  %88 = vperm.xlu0 %87, %v14
  %v89 = vpop.permute.xlu0 %88
  %v91 = vlaneseq
  %v92 = vshrl.u32 %v91, 7
  %v93 = vsub.s32 0, %v92
  %v94 = vrot.slane %v86, %v93
  %v95 = vmul.f32 %v89, %v94
  %v96 = vadd.f32 %v85, %v95
  %v97 = vld [vmem:[%s1 + $0x7] sm:$0x1]
  %98 = vset.pattern.permute.xlu0 7
  %99 = vperm.xlu0 %98, %v14
  %v100 = vpop.permute.xlu0 %99
  %v102 = vlaneseq
  %v103 = vshrl.u32 %v102, 7
  %v104 = vsub.s32 0, %v103
  %v105 = vrot.slane %v97, %v104
  %v106 = vmul.f32 %v100, %v105
  %v107 = vadd.f32 %v96, %v106
  %v108 = vld [vmem:[%s1 + $0x8] sm:$0x1]
  %109 = vset.pattern.permute.xlu0 8
  %110 = vperm.xlu0 %109, %v14
  %v111 = vpop.permute.xlu0 %110
  %v113 = vlaneseq
  %v114 = vshrl.u32 %v113, 7
  %v115 = vsub.s32 0, %v114
  %v116 = vrot.slane %v108, %v115
  %v117 = vmul.f32 %v111, %v116
  %v118 = vadd.f32 %v107, %v117
  %v119 = vld [vmem:[%s1 + $0x9] sm:$0x1]
  %120 = vset.pattern.permute.xlu0 9
  %121 = vperm.xlu0 %120, %v14
  %v122 = vpop.permute.xlu0 %121
  %v124 = vlaneseq
  %v125 = vshrl.u32 %v124, 7
  %v126 = vsub.s32 0, %v125
  %v127 = vrot.slane %v119, %v126
  %v128 = vmul.f32 %v122, %v127
  %v129 = vadd.f32 %v118, %v128
  %v130 = vld [vmem:[%s1 + $0xa] sm:$0x1]
  %131 = vset.pattern.permute.xlu0 10
  %132 = vperm.xlu0 %131, %v14
  %v133 = vpop.permute.xlu0 %132
  %v135 = vlaneseq
  %v136 = vshrl.u32 %v135, 7
  %v137 = vsub.s32 0, %v136
  %v138 = vrot.slane %v130, %v137
  %v139 = vmul.f32 %v133, %v138
  %v140 = vadd.f32 %v129, %v139
  %v141 = vld [vmem:[%s1 + $0xb] sm:$0x1]
  %142 = vset.pattern.permute.xlu0 11
  %143 = vperm.xlu0 %142, %v14
  %v144 = vpop.permute.xlu0 %143
  %v146 = vlaneseq
  %v147 = vshrl.u32 %v146, 7
  %v148 = vsub.s32 0, %v147
  %v149 = vrot.slane %v141, %v148
  %v150 = vmul.f32 %v144, %v149
  %v151 = vadd.f32 %v140, %v150
  %v152 = vmul.f32 %v151, %v151
  %154 = vrot.lane.b32.xlu0 %v152, 120
  %v155 = vpop.permute.xlu0 %154
  %v157 = vadd.f32 %v152, %v155
  %v158 = vrsqrt.pop %v157
  %v159 = vmul.f32 %v157, %v158
  %vm160 = vcmp.eq.f32.partialorder %v157, inf
  %v161 = vsel %vm160, %v157, %v159
  %vm162 = vcmp.eq.f32.partialorder %v157, 0.0
  %v163 = vand.u32 %v157, 2147483648
  %v164 = vsel %vm162, %v163, %v161
  %vm165 = vcmask 64512
  %v166 = vsel %vm165, %v164, 0.0
  %167 = vadd.xlane.f32.xlu0 %v166
  %v168 = vpop.xlane.xlu0 %167
  %v169 = vrcp.pop 8.0
  %v170 = vmul.f32 %v168, %v169
  %v171 = vlaneseq
  %v172 = vshrl.u32 %v171, 7
  %v173 = vsub.s32 0, %v172
  %v174 = vrot.slane %v15, %v173
  %v175 = vmul.f32 %v170, %v174
  %v176 = vlaneseq
  %v177 = vshrl.u32 %v176, 7
  %v178 = vsub.s32 0, %v177
  %v179 = vrot.slane %v16, %v178
  %v180 = vadd.f32 %v175, %v179
  %v181 = vmax.f32 %v180, 0.0
  %v182 = vld [vmem:[%s2] sm:$0x1]
  %184 = vset.pattern.permute.xlu0 0
  %185 = vperm.xlu0 %184, %v181
  %v186 = vpop.permute.xlu0 %185
  %v188 = vlaneseq
  %v189 = vshrl.u32 %v188, 7
  %v190 = vsub.s32 0, %v189
  %v191 = vrot.slane %v182, %v190
  %v192 = vmul.f32 %v186, %v191
  %v193 = vadd.f32 %v192, 0.0
  %v194 = vld [vmem:[%s2 + $0x1] sm:$0x1]
  %195 = vset.pattern.permute.xlu0 1
  %196 = vperm.xlu0 %195, %v181
  %v197 = vpop.permute.xlu0 %196
  %v199 = vlaneseq
  %v200 = vshrl.u32 %v199, 7
  %v201 = vsub.s32 0, %v200
  %v202 = vrot.slane %v194, %v201
  %v203 = vmul.f32 %v197, %v202
  %v204 = vadd.f32 %v193, %v203
  %v205 = vld [vmem:[%s2 + $0x2] sm:$0x1]
  %206 = vset.pattern.permute.xlu0 2
  %207 = vperm.xlu0 %206, %v181
  %v208 = vpop.permute.xlu0 %207
  %v210 = vlaneseq
  %v211 = vshrl.u32 %v210, 7
  %v212 = vsub.s32 0, %v211
  %v213 = vrot.slane %v205, %v212
  %v214 = vmul.f32 %v208, %v213
  %v215 = vadd.f32 %v204, %v214
  %v216 = vld [vmem:[%s2 + $0x3] sm:$0x1]
  %217 = vset.pattern.permute.xlu0 3
  %218 = vperm.xlu0 %217, %v181
  %v219 = vpop.permute.xlu0 %218
  %v221 = vlaneseq
  %v222 = vshrl.u32 %v221, 7
  %v223 = vsub.s32 0, %v222
  %v224 = vrot.slane %v216, %v223
  %v225 = vmul.f32 %v219, %v224
  %v226 = vadd.f32 %v215, %v225
  %v227 = vld [vmem:[%s2 + $0x4] sm:$0x1]
  %228 = vset.pattern.permute.xlu0 4
  %229 = vperm.xlu0 %228, %v181
  %v230 = vpop.permute.xlu0 %229
  %v232 = vlaneseq
  %v233 = vshrl.u32 %v232, 7
  %v234 = vsub.s32 0, %v233
  %v235 = vrot.slane %v227, %v234
  %v236 = vmul.f32 %v230, %v235
  %v237 = vadd.f32 %v226, %v236
  %v238 = vld [vmem:[%s2 + $0x5] sm:$0x1]
  %239 = vset.pattern.permute.xlu0 5
  %240 = vperm.xlu0 %239, %v181
  %v241 = vpop.permute.xlu0 %240
  %v243 = vlaneseq
  %v244 = vshrl.u32 %v243, 7
  %v245 = vsub.s32 0, %v244
  %v246 = vrot.slane %v238, %v245
  %v247 = vmul.f32 %v241, %v246
  %v248 = vadd.f32 %v237, %v247
  %v249 = vld [vmem:[%s2 + $0x6] sm:$0x1]
  %250 = vset.pattern.permute.xlu0 6
  %251 = vperm.xlu0 %250, %v181
  %v252 = vpop.permute.xlu0 %251
  %v254 = vlaneseq
  %v255 = vshrl.u32 %v254, 7
  %v256 = vsub.s32 0, %v255
  %v257 = vrot.slane %v249, %v256
  %v258 = vmul.f32 %v252, %v257
  %v259 = vadd.f32 %v248, %v258
  %v260 = vld [vmem:[%s2 + $0x7] sm:$0x1]
  %261 = vset.pattern.permute.xlu0 7
  %262 = vperm.xlu0 %261, %v181
  %v263 = vpop.permute.xlu0 %262
  %v265 = vlaneseq
  %v266 = vshrl.u32 %v265, 7
  %v267 = vsub.s32 0, %v266
  %v268 = vrot.slane %v260, %v267
  %v269 = vmul.f32 %v263, %v268
  %v270 = vadd.f32 %v259, %v269
  %v271 = vld [vmem:[%s2 + $0x8] sm:$0x1]
  %272 = vset.pattern.permute.xlu0 8
  %273 = vperm.xlu0 %272, %v181
  %v274 = vpop.permute.xlu0 %273
  %v276 = vlaneseq
  %v277 = vshrl.u32 %v276, 7
  %v278 = vsub.s32 0, %v277
  %v279 = vrot.slane %v271, %v278
  %v280 = vmul.f32 %v274, %v279
  %v281 = vadd.f32 %v270, %v280
  %v282 = vld [vmem:[%s2 + $0x9] sm:$0x1]
  %283 = vset.pattern.permute.xlu0 9
  %284 = vperm.xlu0 %283, %v181
  %v285 = vpop.permute.xlu0 %284
  %v287 = vlaneseq
  %v288 = vshrl.u32 %v287, 7
  %v289 = vsub.s32 0, %v288
  %v290 = vrot.slane %v282, %v289
  %v291 = vmul.f32 %v285, %v290
  %v292 = vadd.f32 %v281, %v291
  %v293 = vld [vmem:[%s2 + $0xa] sm:$0x1]
  %294 = vset.pattern.permute.xlu0 10
  %295 = vperm.xlu0 %294, %v181
  %v296 = vpop.permute.xlu0 %295
  %v298 = vlaneseq
  %v299 = vshrl.u32 %v298, 7
  %v300 = vsub.s32 0, %v299
  %v301 = vrot.slane %v293, %v300
  %v302 = vmul.f32 %v296, %v301
  %v303 = vadd.f32 %v292, %v302
  %v304 = vld [vmem:[%s2 + $0xb] sm:$0x1]
  %305 = vset.pattern.permute.xlu0 11
  %306 = vperm.xlu0 %305, %v181
  %v307 = vpop.permute.xlu0 %306
  %v309 = vlaneseq
  %v310 = vshrl.u32 %v309, 7
  %v311 = vsub.s32 0, %v310
  %v312 = vrot.slane %v304, %v311
  %v313 = vmul.f32 %v307, %v312
  %v314 = vadd.f32 %v303, %v313
  %v315 = vld [vmem:[%s2 + $0xc] sm:$0x1]
  %316 = vset.pattern.permute.xlu0 12
  %317 = vperm.xlu0 %316, %v181
  %v318 = vpop.permute.xlu0 %317
  %v320 = vlaneseq
  %v321 = vshrl.u32 %v320, 7
  %v322 = vsub.s32 0, %v321
  %v323 = vrot.slane %v315, %v322
  %v324 = vmul.f32 %v318, %v323
  %v325 = vadd.f32 %v314, %v324
  %v326 = vld [vmem:[%s2 + $0xd] sm:$0x1]
  %327 = vset.pattern.permute.xlu0 13
  %328 = vperm.xlu0 %327, %v181
  %v329 = vpop.permute.xlu0 %328
  %v331 = vlaneseq
  %v332 = vshrl.u32 %v331, 7
  %v333 = vsub.s32 0, %v332
  %v334 = vrot.slane %v326, %v333
  %v335 = vmul.f32 %v329, %v334
  %v336 = vadd.f32 %v325, %v335
  %v337 = vld [vmem:[%s2 + $0xe] sm:$0x1]
  %338 = vset.pattern.permute.xlu0 14
  %339 = vperm.xlu0 %338, %v181
  %v340 = vpop.permute.xlu0 %339
  %v342 = vlaneseq
  %v343 = vshrl.u32 %v342, 7
  %v344 = vsub.s32 0, %v343
  %v345 = vrot.slane %v337, %v344
  %v346 = vmul.f32 %v340, %v345
  %v347 = vadd.f32 %v336, %v346
  %v348 = vld [vmem:[%s2 + $0xf] sm:$0x1]
  %349 = vset.pattern.permute.xlu0 15
  %350 = vperm.xlu0 %349, %v181
  %v351 = vpop.permute.xlu0 %350
  %v353 = vlaneseq
  %v354 = vshrl.u32 %v353, 7
  %v355 = vsub.s32 0, %v354
  %v356 = vrot.slane %v348, %v355
  %v357 = vmul.f32 %v351, %v356
  %v358 = vadd.f32 %v347, %v357
  %v359 = vlaneseq
  %v360 = vshrl.u32 %v359, 7
  %v361 = vsub.s32 0, %v360
  %v362 = vrot.slane %v17, %v361
  %v363 = vadd.f32 %v358, %v362
  %v364 = vsub.f32 0.0, %v18
  %s366 = vtos %v364
  %v367 = vstv %s366
  %v369 = vmul.f32 %v367, %v14
  %v370 = vmul.f32 %v369, 1.442695
  %v371 = vpow.pop %v370
  %373 = vrot.lane.b32.xlu0 %v18, 127
  %v374 = vpop.permute.xlu0 %373
  %s375 = vtos %v374
  %v376 = vstv %s375
  %v378 = vmul.f32 %v376, %v371
  %v379 = vadd.f32 %v378, 1.0
  %v380 = vrcp.pop %v18
  %v381 = vmul.f32 -1.0, %v380
  %v382 = vlog2.pop %v379
  %v383 = vmul.f32 %v382, 0.6931472
  %385 = vrot.lane.b32.xlu0 %v381, 127
  %v386 = vpop.permute.xlu0 %385
  %s387 = vtos %v386
  %v388 = vstv %s387
  %v390 = vmul.f32 %v388, %v383
  %v391 = vmul.f32 %v390, 1.442695
  %v392 = vpow.pop %v391
  %v393 = vld [vmem:[%s1 + $0x10] sm:$0xff]
  %v394 = vmul.f32 %v393, %v363
  %vm395 = vcmask 97280
  %v396 = vsel %vm395, %v394, 0.0
  %v397 = vrot.slane %v396, 4
  %v398 = vadd.f32 %v396, %v397
  %v399 = vrot.slane %v398, 2
  %v400 = vadd.f32 %v398, %v399
  %v401 = vrot.slane %v400, 1
  %v402 = vadd.f32 %v400, %v401
  %v403 = vsub.f32 %v14, %v402
  %v404 = vmax.f32 %v403, 0.0
  %v405 = vadd.f32 %v404, 0.0
  %v406 = vld [vmem:[%s1 + $0x18] sm:$0xff]
  %v407 = vmul.f32 %v406, %v363
  %v408 = vsel %vm395, %v407, 0.0
  %v409 = vrot.slane %v408, 4
  %v410 = vadd.f32 %v408, %v409
  %v411 = vrot.slane %v410, 2
  %v412 = vadd.f32 %v410, %v411
  %v413 = vrot.slane %v412, 1
  %v414 = vadd.f32 %v412, %v413
  %v415 = vsub.f32 %v14, %v414
  %v416 = vmax.f32 %v415, 0.0
  %v417 = vadd.f32 %v405, %v416
  %v418 = vadd.f32 %v392, %v417
  %419 = vst.msk [vmem:[%s3] sm:$0xff] %vm395, %v418
  // Predicated region
  $region14: #{_impl.1} parent=0 // pred_check
    _
  $region15: #{_impl.1} parent=0 // pred_check_branch
    %421 = sbr.rel (0) target = $region17
  $region16: #{_impl.1} parent=0 // pred_region
    _
  $region17: #{_impl.1} parent=0 // pred_fallthru
    _
  // Predicated region
  $region18: #{_impl.1} parent=0 // pred_check
    _
  $region19: #{_impl.1} parent=0 // pred_check_branch
    %423 = sbr.rel (0) target = $region21
  $region20: #{_impl.1} parent=0 // pred_region
    _
  $region21: #{_impl.1} parent=0 // pred_fallthru
    _

</llo_original>
